<compile_context>
chip_gen: v6e
topology: v6e:2x2x1
jax: 0.10.0
libtpu: 0.0.40
codegen_flags: <defaults>
</compile_context>

<pallas_src>
import jax
import jax.numpy as jnp
from jax import lax
from jax.experimental import pallas as pl
from jax.experimental.pallas import tpu as pltpu


def _norm_reg_l1_kernel(ind_ref, mask_ref, feat_ref, tgt_ref, out_ref, acc_ref):
    """
    Grid = (B, n_hw_chunks).  Per-(batch, hw-chunk) program.
      ind_ref  : VMEM int32   (1, 1, Kp)      gather indices into H*W (zero-padded)
      mask_ref : VMEM float32 (1, 1, Kp)      0/1 object mask (zero-padded)
      feat_ref : VMEM native  (1, D, chunk)   NCHW feature slab chunk of this batch
      tgt_ref  : VMEM float32 (1, D, Kp)      regression targets, K on lanes
      out_ref  : VMEM float32 (1, 1, 128)     per-batch partial numerator (splat)
      acc_ref  : VMEM float32 (D, Kp) scratch gathered-pred accumulator
    """
    hw_i = pl.program_id(1)
    n_hw = pl.num_programs(1)
    chunk = feat_ref.shape[2]
    Kp = ind_ref.shape[2]

    @pl.when(hw_i == 0)
    def _():
        acc_ref[...] = jnp.zeros_like(acc_ref)

    # ---- one-hot for this HW chunk only: (chunk, Kp) in bf16 (exact 0/1) ----
    hw_iota = lax.broadcasted_iota(jnp.int32, (chunk, Kp), 0) + hw_i * chunk
    onehot = (hw_iota == ind_ref[0]).astype(jnp.bfloat16)           # (chunk, Kp)

    # ---- MXU gather: acc[d, k] += feat[d, ind[k]] restricted to this chunk ----
    feat = feat_ref[0]                                               # (D, chunk), native dtype
    if feat_ref.dtype == jnp.float32:
        # Exact-enough 2-term hi/lo bf16 split: one nonzero per one-hot column
        # => no accumulation error, only the ~2^-18 relative lo-rounding error.
        hi = feat.astype(jnp.bfloat16)
        lo = (feat - hi.astype(jnp.float32)).astype(jnp.bfloat16)
        partial = (jnp.dot(hi, onehot, preferred_element_type=jnp.float32)
                   + jnp.dot(lo, onehot, preferred_element_type=jnp.float32))
    else:
        partial = jnp.dot(feat.astype(jnp.bfloat16), onehot,
                          preferred_element_type=jnp.float32)
    acc_ref[...] += partial                                          # (D, Kp) f32

    # ---- epilogue: |pred/(target+1e-4) - 1| * mask, summed over this batch ----
    @pl.when(hw_i == n_hw - 1)
    def _():
        tgtT = tgt_ref[0]                                            # (D, Kp) f32
        m = mask_ref[0]                                              # (1, Kp) -> broadcasts over D
        p = acc_ref[...] / (tgtT + 1e-4)
        s = jnp.sum(jnp.abs((p - 1.0) * m))
        out_ref[...] = jnp.full(out_ref.shape, s, dtype=out_ref.dtype)


def norm_reg_l1_loss(output, mask, ind, target):
    """output: (B, D, H, W) NCHW; mask: (B, K); ind: (B, K); target: (B, K, D)."""
    B, D, H, W = output.shape
    K = ind.shape[1]
    HW = H * W

    # --- lane-dense K padding (mask=0 on pad -> padded lanes contribute exactly 0) ---
    Kp = max(128, ((K + 127) // 128) * 128)
    kpad = Kp - K
    ind_p = jnp.pad(ind.astype(jnp.int32), ((0, 0), (0, kpad)))
    mask_f = mask.astype(jnp.float32)
    mask_p = jnp.pad(mask_f, ((0, 0), (0, kpad)))
    tgt_p = jnp.pad(target.astype(jnp.float32), ((0, 0), (0, kpad), (0, 0)),
                    constant_values=1.0)

    ind3 = ind_p.reshape(B, 1, Kp)
    mask3 = mask_p.reshape(B, 1, Kp)
    tgtT = jnp.transpose(tgt_p, (0, 2, 1))                           # (B, D, Kp), tiny

    # --- feature map: free contiguous view, NATIVE dtype (no HBM f32 copy) ---
    feat = output.reshape(B, D, HW)

    # --- HW chunking: <=2048 (multiple of 256 keeps MXU contraction cadence on v6e) ---
    CHUNK = 2048
    if HW <= CHUNK:
        chunk = HW
    else:
        chunk = CHUNK
    n_hw = -(-HW // chunk)
    hw_pad = n_hw * chunk
    if hw_pad != HW:
        # padded positions never match any ind (< HW), so they gather nothing
        feat = jnp.pad(feat, ((0, 0), (0, 0), (0, hw_pad - HW)))

    # TODO(synk): when B == 1 on v7x one TensorCore idles; per-(b, chunk) partial-predT
    # outputs would let the HW axis split across cores, but is not needed here.
    partial = pl.pallas_call(
        _norm_reg_l1_kernel,
        out_shape=jax.ShapeDtypeStruct((B, 1, 128), jnp.float32),
        grid_spec=pltpu.PrefetchScalarGridSpec(
            num_scalar_prefetch=0,
            grid=(B, n_hw),
            in_specs=[
                pl.BlockSpec((1, 1, Kp), lambda b, h: (b, 0, 0)),      # ind
                pl.BlockSpec((1, 1, Kp), lambda b, h: (b, 0, 0)),      # mask
                pl.BlockSpec((1, D, chunk), lambda b, h: (b, 0, h)),   # feat chunk
                pl.BlockSpec((1, D, Kp), lambda b, h: (b, 0, 0)),      # target^T
            ],
            out_specs=pl.BlockSpec((1, 1, 128), lambda b, h: (b, 0, 0)),
            scratch_shapes=[pltpu.VMEM((D, Kp), jnp.float32)],         # predT accumulator
        ),
        compiler_params=pltpu.CompilerParams(
            dimension_semantics=("parallel", "arbitrary"),
        ),
    )(ind3, mask3, feat, tgtT)

    numerator = jnp.sum(partial[:, 0, 0])
    # PyTorch normalizes by the sum of the EXPANDED (B, K, D) mask == D * mask.sum().
    denom = jnp.sum(mask_f) * jnp.float32(D) + jnp.float32(1e-4)
    return numerator / denom


def norm_reg_l1_loss_reference(output, mask, ind, target):
    """Pure-JAX reference matching the PyTorch NormRegL1Loss module."""
    B, D, H, W = output.shape
    feat = jnp.transpose(output, (0, 2, 3, 1)).reshape(B, H * W, D)
    pred = jnp.take_along_axis(feat, ind[:, :, None].astype(jnp.int32), axis=1)  # (B, K, D)
    m = mask.astype(jnp.float32)[:, :, None] * jnp.ones_like(pred)               # expanded mask
    p = pred / (target + 1e-4)
    ones = jnp.ones_like(target)
    loss = jnp.sum(jnp.abs(p * m - ones * m))
    return loss / (jnp.sum(m) + 1e-4)


if __name__ == "__main__":
    B, D, H, W, K = 2, 4, 16, 16, 8   # batch, reg-dim, spatial, max_objects

    key = jax.random.PRNGKey(0)
    k1, k2, k3, k4 = jax.random.split(key, 4)
    output = jax.random.normal(k1, (B, D, H, W), dtype=jnp.float32)
    ind = jax.random.randint(k2, (B, K), 0, H * W, dtype=jnp.int32)
    mask = (jax.random.uniform(k3, (B, K)) > 0.3).astype(jnp.float32)
    # Positive, well-conditioned targets (box sizes), as in CenterNet usage.
    target = jax.random.uniform(k4, (B, K, D), minval=0.5, maxval=2.0, dtype=jnp.float32)

    loss = norm_reg_l1_loss(output, mask, ind, target)
    jax.block_until_ready(loss)

    ref = norm_reg_l1_loss_reference(output, mask, ind, target)
    assert jnp.allclose(loss, ref, atol=1e-5, rtol=1e-5), (loss, ref)

    print("KERNEL_OK")
</pallas_src>

<mosaic_0001>
module attributes {stable_mosaic.version = 11 : i64} {
  func.func @_norm_reg_l1_kernel(%arg0: i32, %arg1: i32, %arg2: memref<1x1x128xi32, #tpu.memory_space<vmem>>, %arg3: memref<1x1x128xf32, #tpu.memory_space<vmem>>, %arg4: memref<1x4x256xf32, #tpu.memory_space<vmem>>, %arg5: memref<1x4x128xf32, #tpu.memory_space<vmem>>, %arg6: memref<1x1x128xf32, #tpu.memory_space<vmem>>, %arg7: memref<4x128xf32, #tpu.memory_space<vmem>>) attributes {dimension_semantics = [#tpu.dimension_semantics<parallel>, #tpu.dimension_semantics<arbitrary>], iteration_bounds = array<i64: 2, 1>, scalar_prefetch = 0 : i64, scratch_operands = 1 : i64, tpu.core_type = #tpu.core_type<tc>, window_params = [{transform_indices = @transform_0, window_bounds = array<i64: 1, 1, 128>}, {transform_indices = @transform_1, window_bounds = array<i64: 1, 1, 128>}, {transform_indices = @transform_2, window_bounds = array<i64: 1, 4, 256>}, {transform_indices = @transform_3, window_bounds = array<i64: 1, 4, 128>}, {transform_indices = @transform_4, window_bounds = array<i64: 1, 1, 128>}]} {
    %c0_i32 = arith.constant 0 : i32
    %0 = arith.cmpi eq, %arg1, %c0_i32 : i32
    %1 = arith.extui %0 : i1 to i32
    %c0_i32_0 = arith.constant 0 : i32
    %2 = arith.cmpi ne, %1, %c0_i32_0 : i32
    scf.if %2 {
      %cst_13 = arith.constant 0.000000e+00 : f32
      %29 = vector.broadcast %cst_13 : f32 to vector<4x128xf32>
      %c0_14 = arith.constant 0 : index
      %c0_15 = arith.constant 0 : index
      %30 = vector.load %arg7[%c0_14, %c0_15] : memref<4x128xf32, #tpu.memory_space<vmem>>, vector<4x128xf32>
      tpu.vector_store %arg7[%c0_14, %c0_15], %29 {strides = array<i32>} : memref<4x128xf32, #tpu.memory_space<vmem>>, vector<4x128xf32>,
    } else {
    }
    %3 = tpu.iota {dimensions = array<i32: 0>} : vector<256x128xi32>
    %c256_i32 = arith.constant 256 : i32
    %4 = arith.muli %arg1, %c256_i32 : i32
    %5 = vector.broadcast %4 : i32 to vector<256x128xi32>
    %6 = arith.addi %3, %5 : vector<256x128xi32>
    %c0 = arith.constant 0 : index
    %c0_1 = arith.constant 0 : index
    %c0_2 = arith.constant 0 : index
    %7 = vector.load %arg2[%c0, %c0_1, %c0_2] : memref<1x1x128xi32, #tpu.memory_space<vmem>>, vector<1x1x128xi32>
    %8 = vector.shape_cast %7 : vector<1x1x128xi32> to vector<1x128xi32>
    %9 = vector.broadcast %8 : vector<1x128xi32> to vector<256x128xi32>
    %10 = arith.cmpi eq, %6, %9 : vector<256x128xi32>
    %11 = arith.extui %10 : vector<256x128xi1> to vector<256x128xi32>
    %12 = arith.sitofp %11 : vector<256x128xi32> to vector<256x128xf32>
    %13 = arith.truncf %12 : vector<256x128xf32> to vector<256x128xbf16>
    %c0_3 = arith.constant 0 : index
    %c0_4 = arith.constant 0 : index
    %c0_5 = arith.constant 0 : index
    %14 = vector.load %arg4[%c0_3, %c0_4, %c0_5] : memref<1x4x256xf32, #tpu.memory_space<vmem>>, vector<1x4x256xf32>
    %15 = vector.shape_cast %14 : vector<1x4x256xf32> to vector<4x256xf32>
    %16 = arith.truncf %15 : vector<4x256xf32> to vector<4x256xbf16>
    %17 = arith.extf %16 : vector<4x256xbf16> to vector<4x256xf32>
    %18 = arith.subf %15, %17 : vector<4x256xf32>
    %19 = arith.truncf %18 : vector<4x256xf32> to vector<4x256xbf16>
    %cst = arith.constant dense<0.000000e+00> : vector<4x128xf32>
    %20 = tpu.matmul %16, %13, %cst {dimension_numbers = #tpu.dot_dimension_numbers<[1], [0], [0], [1], [0, 0, 1, 1], [], []>} : vector<4x256xbf16>, vector<256x128xbf16>, vector<4x128xf32> -> vector<4x128xf32>
    %cst_6 = arith.constant dense<0.000000e+00> : vector<4x128xf32>
    %21 = tpu.matmul %19, %13, %cst_6 {dimension_numbers = #tpu.dot_dimension_numbers<[1], [0], [0], [1], [0, 0, 1, 1], [], []>} : vector<4x256xbf16>, vector<256x128xbf16>, vector<4x128xf32> -> vector<4x128xf32>
    %22 = arith.addf %20, %21 : vector<4x128xf32>
    %c0_7 = arith.constant 0 : index
    %c0_8 = arith.constant 0 : index
    %23 = vector.load %arg7[%c0_7, %c0_8] : memref<4x128xf32, #tpu.memory_space<vmem>>, vector<4x128xf32>
    %24 = arith.addf %23, %22 : vector<4x128xf32>
    %c0_9 = arith.constant 0 : index
    %c0_10 = arith.constant 0 : index
    %25 = vector.load %arg7[%c0_9, %c0_10] : memref<4x128xf32, #tpu.memory_space<vmem>>, vector<4x128xf32>
    tpu.vector_store %arg7[%c0_9, %c0_10], %24 {strides = array<i32>} : memref<4x128xf32, #tpu.memory_space<vmem>>, vector<4x128xf32>,
    %c0_i32_11 = arith.constant 0 : i32
    %26 = arith.cmpi eq, %arg1, %c0_i32_11 : i32
    %27 = arith.extui %26 : i1 to i32
    %c0_i32_12 = arith.constant 0 : i32
    %28 = arith.cmpi ne, %27, %c0_i32_12 : i32
    scf.if %28 {
      %c0_13 = arith.constant 0 : index
      %c0_14 = arith.constant 0 : index
      %c0_15 = arith.constant 0 : index
      %29 = vector.load %arg5[%c0_13, %c0_14, %c0_15] : memref<1x4x128xf32, #tpu.memory_space<vmem>>, vector<1x4x128xf32>
      %30 = vector.shape_cast %29 : vector<1x4x128xf32> to vector<4x128xf32>
      %c0_16 = arith.constant 0 : index
      %c0_17 = arith.constant 0 : index
      %c0_18 = arith.constant 0 : index
      %31 = vector.load %arg3[%c0_16, %c0_17, %c0_18] : memref<1x1x128xf32, #tpu.memory_space<vmem>>, vector<1x1x128xf32>
      %32 = vector.shape_cast %31 : vector<1x1x128xf32> to vector<1x128xf32>
      %c0_19 = arith.constant 0 : index
      %c0_20 = arith.constant 0 : index
      %33 = vector.load %arg7[%c0_19, %c0_20] : memref<4x128xf32, #tpu.memory_space<vmem>>, vector<4x128xf32>
      %cst_21 = arith.constant 9.99999974E-5 : f32
      %34 = vector.broadcast %cst_21 : f32 to vector<4x128xf32>
      %35 = arith.addf %30, %34 : vector<4x128xf32>
      %36 = arith.divf %33, %35 : vector<4x128xf32>
      %cst_22 = arith.constant 1.000000e+00 : f32
      %37 = vector.broadcast %cst_22 : f32 to vector<4x128xf32>
      %38 = arith.subf %36, %37 : vector<4x128xf32>
      %39 = vector.broadcast %32 : vector<1x128xf32> to vector<4x128xf32>
      %40 = arith.mulf %38, %39 : vector<4x128xf32>
      %41 = math.absf %40 : vector<4x128xf32>
      %42 = vector.shape_cast %41 : vector<4x128xf32> to vector<1x4x128xf32>
      %cst_23 = arith.constant dense<0.000000e+00> : vector<1xf32>
      %43 = vector.multi_reduction <add>, %42, %cst_23 [1, 2] : vector<1x4x128xf32> to vector<1xf32>
      %44 = vector.shape_cast %43 : vector<1xf32> to vector<1x1x1xf32>
      %45 = vector.extract %44[0, 0, 0] : f32 from vector<1x1x1xf32>
      %46 = vector.broadcast %45 : f32 to vector<1x1x128xf32>
      %c0_24 = arith.constant 0 : index
      %c0_25 = arith.constant 0 : index
      %c0_26 = arith.constant 0 : index
      %47 = vector.load %arg6[%c0_24, %c0_25, %c0_26] : memref<1x1x128xf32, #tpu.memory_space<vmem>>, vector<1x1x128xf32>
      tpu.vector_store %arg6[%c0_24, %c0_25, %c0_26], %46 {strides = array<i32>} : memref<1x1x128xf32, #tpu.memory_space<vmem>>, vector<1x1x128xf32>,
    } else {
    }
    return
  }
  func.func @transform_0(%arg0: i32, %arg1: i32) -> (i32, i32, i32) {
    %c0_i32 = arith.constant 0 : i32
    %c0_i32_0 = arith.constant 0 : i32
    %c0_i32_1 = arith.constant 0 : i32
    return %arg0, %c0_i32, %c0_i32_0 : i32, i32, i32
  }
  func.func @transform_1(%arg0: i32, %arg1: i32) -> (i32, i32, i32) {
    %c0_i32 = arith.constant 0 : i32
    %c0_i32_0 = arith.constant 0 : i32
    %c0_i32_1 = arith.constant 0 : i32
    return %arg0, %c0_i32, %c0_i32_0 : i32, i32, i32
  }
  func.func @transform_2(%arg0: i32, %arg1: i32) -> (i32, i32, i32) {
    %c0_i32 = arith.constant 0 : i32
    %c0_i32_0 = arith.constant 0 : i32
    return %arg0, %c0_i32, %arg1 : i32, i32, i32
  }
  func.func @transform_3(%arg0: i32, %arg1: i32) -> (i32, i32, i32) {
    %c0_i32 = arith.constant 0 : i32
    %c0_i32_0 = arith.constant 0 : i32
    %c0_i32_1 = arith.constant 0 : i32
    return %arg0, %c0_i32, %c0_i32_0 : i32, i32, i32
  }
  func.func @transform_4(%arg0: i32, %arg1: i32) -> (i32, i32, i32) {
    %c0_i32 = arith.constant 0 : i32
    %c0_i32_0 = arith.constant 0 : i32
    %c0_i32_1 = arith.constant 0 : i32
    return %arg0, %c0_i32, %c0_i32_0 : i32, i32, i32
  }
}

</mosaic_0001>

<llo_original>
// kernel: tpu_custom_call.1
$region0: #{tpu_custom_call.1}
  #allocation0 [shape = 'u32[]', space=smem, size = 0x4, offset = 0x4, fixed_abs, tag = 'smem constant byte address 0x4 - core index']
  #allocation1 [shape = 'u32[144,128]{1,0:T(1,128)}', space=vmem, size = 0x12000, scoped, tag = 'internal scratch']
  #allocation2 [shape = 'f32[4,128]{1,0:T(4,128)}', space=vmem, size = 0x800, scoped, tag = 'scratch operand']
  %s0 = inlined_call_operand.hbm [shape: s32[2,1,128], index: 0, kind: input, shape index: {}]
  %s1 = inlined_call_operand.hbm [shape: f32[2,1,128], index: 1, kind: input, shape index: {}]
  %s2 = inlined_call_operand.hbm [shape: f32[2,4,256], index: 2, kind: input, shape index: {}]
  %s3 = inlined_call_operand.hbm [shape: f32[2,4,128], index: 3, kind: input, shape index: {}]
  %s4 = inlined_call_operand.hbm [shape: f32[2,1,128], index: 4, kind: output, shape index: {}]
  %s5 = sld [smem:[#allocation0]]
  $region73: #{tpu_custom_call.1} parent=0
    _
  %s7 = ssub.s32 1, %s5
  %s8 = scalar_select 0, %s7, %s5
  $region1: #{tpu_custom_call.1} parent=0
    #allocation3 [shape = 'u8[1024]{0}', space=vmem, size = 0x400, scoped, tag = 'input window, operand 0']
    #allocation4 [shape = 's32[2]{0}', space=sflag, size = 0x8, scoped, tag = 'scoped memory for tpu_custom_call.1']
    #allocation5 [shape = 's32[2]{0}', space=sflag, size = 0x8, scoped, tag = 'scoped memory for tpu_custom_call.1']
    #allocation6 [shape = 'u8[1024]{0}', space=vmem, size = 0x400, scoped, tag = 'input window, operand 1']
    #allocation7 [shape = 's32[2]{0}', space=sflag, size = 0x8, scoped, tag = 'scoped memory for tpu_custom_call.1']
    #allocation8 [shape = 'u8[8192]{0}', space=vmem, size = 0x2000, scoped, tag = 'input window, operand 2']
    #allocation9 [shape = 'u8[4096]{0}', space=vmem, size = 0x1000, scoped, tag = 'input window, operand 3']
    #allocation10 [shape = 's32[2]{0}', space=sflag, size = 0x8, scoped, tag = 'scoped memory for tpu_custom_call.1']
    #allocation11 [shape = 'u8[1024]{0}', space=vmem, size = 0x400, scoped, tag = 'output window, operand 0']
    %9 = vsyncpa [#allocation4], 0
    %s10 = scalar_lea.sflag [#allocation4], 1
    %11 = vsyncpa %s10, 0
    %12 = vsyncpa [#allocation7], 0
    %s13 = scalar_lea.sflag [#allocation7], 1
    %14 = vsyncpa %s13, 0
    %15 = vsyncpa [#allocation10], 0
    %s16 = scalar_lea.sflag [#allocation10], 1
    %17 = vsyncpa %s16, 0
    %18 = vsyncpa [#allocation5], 0
    %s19 = scalar_lea.sflag [#allocation5], 1
    %20 = vsyncpa %s19, 0
    loop: start=0, step=1, limit=4
    $region2: #{tpu_custom_call.1} parent=1 // loop_pre_header
      _
    $region3: #{tpu_custom_call.1} parent=1 // loop_header
      %s22 = sphi 0, %s26
      %p23 = scmp.ge.s32.totalorder %s22, 4
      %s29 = sphi 0, %s41
      %s30 = sphi 0, %s37
      %s31 = sphi 0, %s29
      %s32 = sphi 0, %s30
      %s33 = sphi 0, %s31
      %s34 = sphi 0, %s32
      %s44 = sphi 0, %s46
      %s47 = sphi 0, %s44
      %s48 = sphi 0, %s47
      %s64 = sphi 0, %s48
      %s70 = sphi 0, %s72
      %s73 = sphi 0, %s70
      %s74 = sphi 0, %s73
      %s90 = sphi 0, %s74
      %s98 = sphi 0, %s100
      %s101 = sphi 0, %s98
      %s102 = sphi 0, %s101
      %s118 = sphi 0, %s102
      %s124 = sphi 0, %s126
      %s127 = sphi 0, %s124
      %s128 = sphi 0, %s127
      %s144 = sphi 0, %s128
      %s150 = sphi 0, %s152
      %s153 = sphi 0, %s150
      %s154 = sphi 0, %s153
      %s170 = sphi 0, %s154
    $region4: #{tpu_custom_call.1} parent=1 // loop_header_branch
      %25 = sbr.rel (%p23) target = $region8
    $region5: #{tpu_custom_call.1} parent=1 // loop_body
      %s27 = ssub.s32 %s22, 1
      %s28 = ssub.s32 %s22, 2
      %s35 = sadd.s32 1, %s30
      %p36 = scmp.ge.s32.totalorder %s35, 1
      %s37 = scalar_select %p36, 0, %s35
      %s38 = sadd.s32 1, %s29
      %s39 = scalar_select %p36, %s38, %s29
      %p40 = scmp.ge.s32.totalorder %s39, 2
      %s41 = scalar_select %p40, 0, %s39
      %s42 = ssub.s32 %s29, %s41
      %p43 = scmp.eq.s32.totalorder %s42, 0
      %s45 = sadd.s32 %s44, 1
      %s46 = scalar_select %p43, %s44, %s45
      %p49 = pneg %p43
      %p50 = scmp.eq.s32.totalorder %s22, 1
      %p51 = por %p49, %p50
      %p52 = scmp.ne.s32.totalorder %s44, %s47
      %p53 = scmp.eq.s32.totalorder %s22, 0
      %p54 = por %p52, %p53
      %p55 = scmp.ne.s32.totalorder %s44, %s47
      %p56 = scmp.eq.s32.totalorder %s27, 1
      %p57 = por %p55, %p56
      %p58 = scmp.ne.s32.totalorder %s47, %s48
      %p59 = scmp.eq.s32.totalorder %s27, 0
      %p60 = por %p58, %p59
      %p61 = scmp.ne.s32.totalorder %s47, %s48
      %p62 = scmp.eq.s32.totalorder %s28, 1
      %p63 = por %p61, %p62
      %p65 = scmp.ne.s32.totalorder %s48, %s64
      %p66 = scmp.eq.s32.totalorder %s28, 0
      %p67 = por %p65, %p66
      %s68 = ssub.s32 %s29, %s41
      %p69 = scmp.eq.s32.totalorder %s68, 0
      %s71 = sadd.s32 %s70, 1
      %s72 = scalar_select %p69, %s70, %s71
      %p75 = pneg %p69
      %p76 = scmp.eq.s32.totalorder %s22, 1
      %p77 = por %p75, %p76
      %p78 = scmp.ne.s32.totalorder %s70, %s73
      %p79 = scmp.eq.s32.totalorder %s22, 0
      %p80 = por %p78, %p79
      %p81 = scmp.ne.s32.totalorder %s70, %s73
      %p82 = scmp.eq.s32.totalorder %s27, 1
      %p83 = por %p81, %p82
      %p84 = scmp.ne.s32.totalorder %s73, %s74
      %p85 = scmp.eq.s32.totalorder %s27, 0
      %p86 = por %p84, %p85
      %p87 = scmp.ne.s32.totalorder %s73, %s74
      %p88 = scmp.eq.s32.totalorder %s28, 1
      %p89 = por %p87, %p88
      %p91 = scmp.ne.s32.totalorder %s74, %s90
      %p92 = scmp.eq.s32.totalorder %s28, 0
      %p93 = por %p91, %p92
      %s94 = ssub.s32 %s29, %s41
      %s95 = ssub.s32 %s30, %s37
      %s96 = sor.u32 %s94, %s95
      %p97 = scmp.eq.s32.totalorder %s96, 0
      %s99 = sadd.s32 %s98, 1
      %s100 = scalar_select %p97, %s98, %s99
      %p103 = pneg %p97
      %p104 = scmp.eq.s32.totalorder %s22, 1
      %p105 = por %p103, %p104
      %p106 = scmp.ne.s32.totalorder %s98, %s101
      %p107 = scmp.eq.s32.totalorder %s22, 0
      %p108 = por %p106, %p107
      %p109 = scmp.ne.s32.totalorder %s98, %s101
      %p110 = scmp.eq.s32.totalorder %s27, 1
      %p111 = por %p109, %p110
      %p112 = scmp.ne.s32.totalorder %s101, %s102
      %p113 = scmp.eq.s32.totalorder %s27, 0
      %p114 = por %p112, %p113
      %p115 = scmp.ne.s32.totalorder %s101, %s102
      %p116 = scmp.eq.s32.totalorder %s28, 1
      %p117 = por %p115, %p116
      %p119 = scmp.ne.s32.totalorder %s102, %s118
      %p120 = scmp.eq.s32.totalorder %s28, 0
      %p121 = por %p119, %p120
      %s122 = ssub.s32 %s29, %s41
      %p123 = scmp.eq.s32.totalorder %s122, 0
      %s125 = sadd.s32 %s124, 1
      %s126 = scalar_select %p123, %s124, %s125
      %p129 = pneg %p123
      %p130 = scmp.eq.s32.totalorder %s22, 1
      %p131 = por %p129, %p130
      %p132 = scmp.ne.s32.totalorder %s124, %s127
      %p133 = scmp.eq.s32.totalorder %s22, 0
      %p134 = por %p132, %p133
      %p135 = scmp.ne.s32.totalorder %s124, %s127
      %p136 = scmp.eq.s32.totalorder %s27, 1
      %p137 = por %p135, %p136
      %p138 = scmp.ne.s32.totalorder %s127, %s128
      %p139 = scmp.eq.s32.totalorder %s27, 0
      %p140 = por %p138, %p139
      %p141 = scmp.ne.s32.totalorder %s127, %s128
      %p142 = scmp.eq.s32.totalorder %s28, 1
      %p143 = por %p141, %p142
      %p145 = scmp.ne.s32.totalorder %s128, %s144
      %p146 = scmp.eq.s32.totalorder %s28, 0
      %p147 = por %p145, %p146
      %s148 = ssub.s32 %s29, %s41
      %p149 = scmp.eq.s32.totalorder %s148, 0
      %s151 = sadd.s32 %s150, 1
      %s152 = scalar_select %p149, %s150, %s151
      %p155 = pneg %p149
      %p156 = scmp.eq.s32.totalorder %s22, 1
      %p157 = por %p155, %p156
      %p158 = scmp.ne.s32.totalorder %s150, %s153
      %p159 = scmp.eq.s32.totalorder %s22, 0
      %p160 = por %p158, %p159
      %p161 = scmp.ne.s32.totalorder %s150, %s153
      %p162 = scmp.eq.s32.totalorder %s27, 1
      %p163 = por %p161, %p162
      %p164 = scmp.ne.s32.totalorder %s153, %s154
      %p165 = scmp.eq.s32.totalorder %s27, 0
      %p166 = por %p164, %p165
      %p167 = scmp.ne.s32.totalorder %s153, %s154
      %p168 = scmp.eq.s32.totalorder %s28, 1
      %p169 = por %p167, %p168
      %p171 = scmp.ne.s32.totalorder %s154, %s170
      %p172 = scmp.eq.s32.totalorder %s28, 0
      %p173 = por %p171, %p172
      %p174 = scmp.le.s32.totalorder 1, %s22
      %p175 = scmp.lt.s32.totalorder %s22, 3
      %p176 = pnand %p174, %p175
      %p177 = pneg %p176
      // Predicated region
      $region9: #{tpu_custom_call.1} parent=5 // pred_check
        _
      $region10: #{tpu_custom_call.1} parent=5 // pred_check_branch
        %179 = sbr.rel (%p176) target = $region12
      $region11: #{tpu_custom_call.1} parent=5 // pred_region
        %s180 = ssub.s32 %s22, 1
      $region12: #{tpu_custom_call.1} parent=5 // pred_fallthru
        _
      %p181 = scmp.lt.s32.totalorder %s22, 2
      // Predicated region
      $region13: #{tpu_custom_call.1} parent=5 // pred_check
        %p182 = pneg %p181
      $region14: #{tpu_custom_call.1} parent=5 // pred_check_branch
        %184 = sbr.rel (%p182) target = $region16
      $region15: #{tpu_custom_call.1} parent=5 // pred_region
        // Predicated region
        $region17: #{tpu_custom_call.1} parent=15 // pred_check
          %p185 = pneg %p54
        $region18: #{tpu_custom_call.1} parent=15 // pred_check_branch
          %187 = sbr.rel (%p185) target = $region20
        $region19: #{tpu_custom_call.1} parent=15 // pred_region
          %s188 = sand.u32 %s44, 1
          %s189 = scalar_lea.sflag [#allocation4], %s188
          %s190 = sand.u32 %s44, 1
          %s191 = scalar_lea.vmem [#allocation3], %s190
          %s193 = ssub.s32 16, 16
          %194 = vsyncadd %s189, %s193
          %s195 = smul.addr %s29, 16
          %s196 = scalar_lea.hbm %s0, %s195
          %s198 = sshll.u32 %s191, 4
          %s199 = int_to_ptr.vmem [resolvable:$true] %s198
          %201 = dma.hbm_to_vmem [thread:$0]  %s196, 16, %s199, %s189
        $region20: #{tpu_custom_call.1} parent=15 // pred_fallthru
          _
        // Predicated region
        $region21: #{tpu_custom_call.1} parent=15 // pred_check
          %p202 = pneg %p80
        $region22: #{tpu_custom_call.1} parent=15 // pred_check_branch
          %204 = sbr.rel (%p202) target = $region24
        $region23: #{tpu_custom_call.1} parent=15 // pred_region
          %s205 = sand.u32 %s22, 1
          %s206 = scalar_lea.sflag [#allocation7], %s205
          %s207 = sand.u32 %s70, 1
          %s208 = scalar_lea.vmem [#allocation6], %s207
          %s210 = ssub.s32 16, 16
          %211 = vsyncadd %s206, %s210
          %s212 = smul.addr %s29, 16
          %s213 = scalar_lea.hbm %s1, %s212
          %s215 = sshll.u32 %s208, 4
          %s216 = int_to_ptr.vmem [resolvable:$true] %s215
          %218 = dma.hbm_to_vmem [thread:$0]  %s213, 16, %s216, %s206
        $region24: #{tpu_custom_call.1} parent=15 // pred_fallthru
          _
        // Predicated region
        $region25: #{tpu_custom_call.1} parent=15 // pred_check
          %p219 = pneg %p108
        $region26: #{tpu_custom_call.1} parent=15 // pred_check_branch
          %221 = sbr.rel (%p219) target = $region28
        $region27: #{tpu_custom_call.1} parent=15 // pred_region
          %s222 = sand.u32 %s22, 1
          %s223 = scalar_lea.sflag [#allocation7], %s222
          %s224 = sand.u32 %s98, 1
          %s225 = smul.addr %s224, 8
          %s226 = scalar_lea.vmem [#allocation8], %s225
          %s227 = smul.u32 2, %s30
          %s229 = ssub.s32 128, 128
          %230 = vsyncadd %s223, %s229
          %s231 = smul.addr %s29, 2
          %s232 = sadd.s32 %s227, %s231
          %s233 = smul.addr %s232, 64
          %s234 = scalar_lea.hbm %s2, %s233
          %s236 = sshll.u32 %s226, 4
          %s237 = int_to_ptr.vmem [resolvable:$true] %s236
          %239 = dma.hbm_to_vmem [thread:$0]  %s234, 128, %s237, %s223
        $region28: #{tpu_custom_call.1} parent=15 // pred_fallthru
          _
        // Predicated region
        $region29: #{tpu_custom_call.1} parent=15 // pred_check
          %p240 = pneg %p134
        $region30: #{tpu_custom_call.1} parent=15 // pred_check_branch
          %242 = sbr.rel (%p240) target = $region32
        $region31: #{tpu_custom_call.1} parent=15 // pred_region
          %s243 = sand.u32 %s124, 1
          %s244 = scalar_lea.sflag [#allocation10], %s243
          %s245 = sand.u32 %s124, 1
          %s246 = smul.addr %s245, 4
          %s247 = scalar_lea.vmem [#allocation9], %s246
          %s249 = ssub.s32 64, 64
          %250 = vsyncadd %s244, %s249
          %s251 = smul.addr %s29, 64
          %s252 = scalar_lea.hbm %s3, %s251
          %s254 = sshll.u32 %s247, 4
          %s255 = int_to_ptr.vmem [resolvable:$true] %s254
          %257 = dma.hbm_to_vmem [thread:$0]  %s252, 64, %s255, %s244
        $region32: #{tpu_custom_call.1} parent=15 // pred_fallthru
          _
      $region16: #{tpu_custom_call.1} parent=5 // pred_fallthru
        _
      %p258 = scmp.le.s32.totalorder 1, %s22
      %p259 = scmp.lt.s32.totalorder %s22, 3
      %p260 = pnand %p258, %p259
      %p261 = pneg %p260
      // Predicated region
      $region33: #{tpu_custom_call.1} parent=5 // pred_check
        _
      $region34: #{tpu_custom_call.1} parent=5 // pred_check_branch
        %263 = sbr.rel (%p260) target = $region36
      $region35: #{tpu_custom_call.1} parent=5 // pred_region
        %s264 = ssub.s32 %s22, 1
        %s265 = sand.u32 %s47, 1
        %s266 = scalar_lea.sflag [#allocation4], %s265
        %s267 = sand.u32 %s47, 1
        %s268 = scalar_lea.vmem [#allocation3], %s267
        // Predicated region
        $region37: #{tpu_custom_call.1} parent=35 // pred_check
          %p269 = pneg %p60
        $region38: #{tpu_custom_call.1} parent=35 // pred_check_branch
          %271 = sbr.rel (%p269) target = $region40
        $region39: #{tpu_custom_call.1} parent=35 // pred_region
          %272 = dma.done %s266, 16
        $region40: #{tpu_custom_call.1} parent=35 // pred_fallthru
          _
        %s273 = sand.u32 %s27, 1
        %s274 = scalar_lea.sflag [#allocation7], %s273
        %s275 = sand.u32 %s73, 1
        %s276 = scalar_lea.vmem [#allocation6], %s275
        // Predicated region
        $region41: #{tpu_custom_call.1} parent=35 // pred_check
          %p277 = pneg %p86
        $region42: #{tpu_custom_call.1} parent=35 // pred_check_branch
          %279 = sbr.rel (%p277) target = $region44
        $region43: #{tpu_custom_call.1} parent=35 // pred_region
          %280 = dma.done %s274, 16
        $region44: #{tpu_custom_call.1} parent=35 // pred_fallthru
          _
        %s281 = sand.u32 %s27, 1
        %s282 = scalar_lea.sflag [#allocation7], %s281
        %s283 = sand.u32 %s101, 1
        %s284 = smul.addr %s283, 8
        %s285 = scalar_lea.vmem [#allocation8], %s284
        // Predicated region
        $region45: #{tpu_custom_call.1} parent=35 // pred_check
          %p286 = pneg %p114
        $region46: #{tpu_custom_call.1} parent=35 // pred_check_branch
          %288 = sbr.rel (%p286) target = $region48
        $region47: #{tpu_custom_call.1} parent=35 // pred_region
          %289 = dma.done %s282, 128
        $region48: #{tpu_custom_call.1} parent=35 // pred_fallthru
          _
        %s290 = sand.u32 %s127, 1
        %s291 = scalar_lea.sflag [#allocation10], %s290
        %s292 = sand.u32 %s127, 1
        %s293 = smul.addr %s292, 4
        %s294 = scalar_lea.vmem [#allocation9], %s293
        // Predicated region
        $region49: #{tpu_custom_call.1} parent=35 // pred_check
          %p295 = pneg %p140
        $region50: #{tpu_custom_call.1} parent=35 // pred_check_branch
          %297 = sbr.rel (%p295) target = $region52
        $region51: #{tpu_custom_call.1} parent=35 // pred_region
          %298 = dma.done %s291, 64
        $region52: #{tpu_custom_call.1} parent=35 // pred_fallthru
          _
        %s299 = sand.u32 %s47, 1
        %s300 = scalar_lea.sflag [#allocation4], %s299
        %s301 = sand.u32 %s47, 1
        %s302 = scalar_lea.vmem [#allocation3], %s301
        %p303 = pneg %p60
        %p304 = pneg %p57
        %s305 = sand.u32 %s27, 1
        %s306 = scalar_lea.sflag [#allocation7], %s305
        %s307 = sand.u32 %s73, 1
        %s308 = scalar_lea.vmem [#allocation6], %s307
        %p309 = pneg %p86
        %p310 = pneg %p83
        %s311 = sand.u32 %s27, 1
        %s312 = scalar_lea.sflag [#allocation7], %s311
        %s313 = sand.u32 %s101, 1
        %s314 = smul.addr %s313, 8
        %s315 = scalar_lea.vmem [#allocation8], %s314
        %p316 = pneg %p114
        %p317 = pneg %p111
        %s318 = sand.u32 %s127, 1
        %s319 = scalar_lea.sflag [#allocation10], %s318
        %s320 = sand.u32 %s127, 1
        %s321 = smul.addr %s320, 4
        %s322 = scalar_lea.vmem [#allocation9], %s321
        %p323 = pneg %p140
        %p324 = pneg %p137
        %p325 = pneg %p166
        %p326 = pneg %p163
        %s327 = sand.u32 %s153, 1
        %s328 = scalar_lea.sflag [#allocation5], %s327
        %s329 = sand.u32 %s153, 1
        %s330 = scalar_lea.vmem [#allocation11], %s329
        %s331 = smul.u32 2, %s32
        %p333 = scmp.eq.s32.totalorder %s32, 0
        // Predicated region
        $region53: #{tpu_custom_call.1} parent=35 // pred_check
          %p334 = pneg %p333
        $region54: #{tpu_custom_call.1} parent=35 // pred_check_branch
          %336 = sbr.rel (%p334) target = $region56
        $region55: #{tpu_custom_call.1} parent=35 // pred_region
          %337 = vst [vmem:[#allocation2] sm:$0xf] 0.0
        $region56: #{tpu_custom_call.1} parent=35 // pred_fallthru
          _
        %v338 = vlaneseq
        %v339 = vshrl.u32 %v338, 7
        %v340 = vadd.s32 %v339, 8
        %v341 = vadd.s32 %v339, 16
        %v342 = vadd.s32 %v339, 24
        %v343 = vadd.s32 %v339, 32
        %v344 = vadd.s32 %v339, 40
        %v345 = vadd.s32 %v339, 48
        %v346 = vadd.s32 %v339, 56
        %v347 = vadd.s32 %v339, 64
        %v348 = vadd.s32 %v339, 72
        %v349 = vadd.s32 %v339, 80
        %v350 = vadd.s32 %v339, 88
        %v351 = vadd.s32 %v339, 96
        %v352 = vadd.s32 %v339, 104
        %v353 = vadd.s32 %v339, 112
        %v354 = vadd.s32 %v339, 120
        %v355 = vadd.s32 %v339, 128
        %v356 = vadd.s32 %v339, 136
        %v357 = vadd.s32 %v339, 144
        %v358 = vadd.s32 %v339, 152
        %v359 = vadd.s32 %v339, 160
        %v360 = vadd.s32 %v339, 168
        %v361 = vadd.s32 %v339, 176
        %v362 = vadd.s32 %v339, 184
        %v363 = vadd.s32 %v339, 192
        %v364 = vadd.s32 %v339, 200
        %v365 = vadd.s32 %v339, 208
        %v366 = vadd.s32 %v339, 216
        %v367 = vadd.s32 %v339, 224
        %v368 = vadd.s32 %v339, 232
        %v369 = vadd.s32 %v339, 240
        %v370 = vadd.s32 %v339, 248
        %s371 = smul.u32 %s32, 256
        %v372 = vstv %s371
        %v373 = vadd.s32 %v339, %v372
        %v374 = vadd.s32 %v340, %v372
        %v375 = vadd.s32 %v341, %v372
        %v376 = vadd.s32 %v342, %v372
        %v377 = vadd.s32 %v343, %v372
        %v378 = vadd.s32 %v344, %v372
        %v379 = vadd.s32 %v345, %v372
        %v380 = vadd.s32 %v346, %v372
        %v381 = vadd.s32 %v347, %v372
        %v382 = vadd.s32 %v348, %v372
        %v383 = vadd.s32 %v349, %v372
        %v384 = vadd.s32 %v350, %v372
        %v385 = vadd.s32 %v351, %v372
        %v386 = vadd.s32 %v352, %v372
        %v387 = vadd.s32 %v353, %v372
        %v388 = vadd.s32 %v354, %v372
        %v389 = vadd.s32 %v355, %v372
        %v390 = vadd.s32 %v356, %v372
        %v391 = vadd.s32 %v357, %v372
        %v392 = vadd.s32 %v358, %v372
        %v393 = vadd.s32 %v359, %v372
        %v394 = vadd.s32 %v360, %v372
        %v395 = vadd.s32 %v361, %v372
        %v396 = vadd.s32 %v362, %v372
        %v397 = vadd.s32 %v363, %v372
        %v398 = vadd.s32 %v364, %v372
        %v399 = vadd.s32 %v365, %v372
        %v400 = vadd.s32 %v366, %v372
        %v401 = vadd.s32 %v367, %v372
        %v402 = vadd.s32 %v368, %v372
        %v403 = vadd.s32 %v369, %v372
        %v404 = vadd.s32 %v370, %v372
        %v405 = vld [vmem:[%s268] sm:$0x1]
        %v406 = vlaneseq
        %v407 = vshrl.u32 %v406, 7
        %v408 = vsub.s32 0, %v407
        %v409 = vrot.slane %v405, %v408
        %vm410 = vcmp.eq.s32.totalorder %v373, %v409
        %vm411 = vcmp.eq.s32.totalorder %v374, %v409
        %vm412 = vcmp.eq.s32.totalorder %v375, %v409
        %vm413 = vcmp.eq.s32.totalorder %v376, %v409
        %vm414 = vcmp.eq.s32.totalorder %v377, %v409
        %vm415 = vcmp.eq.s32.totalorder %v378, %v409
        %vm416 = vcmp.eq.s32.totalorder %v379, %v409
        %vm417 = vcmp.eq.s32.totalorder %v380, %v409
        %vm418 = vcmp.eq.s32.totalorder %v381, %v409
        %vm419 = vcmp.eq.s32.totalorder %v382, %v409
        %vm420 = vcmp.eq.s32.totalorder %v383, %v409
        %vm421 = vcmp.eq.s32.totalorder %v384, %v409
        %vm422 = vcmp.eq.s32.totalorder %v385, %v409
        %vm423 = vcmp.eq.s32.totalorder %v386, %v409
        %vm424 = vcmp.eq.s32.totalorder %v387, %v409
        %vm425 = vcmp.eq.s32.totalorder %v388, %v409
        %vm426 = vcmp.eq.s32.totalorder %v389, %v409
        %vm427 = vcmp.eq.s32.totalorder %v390, %v409
        %vm428 = vcmp.eq.s32.totalorder %v391, %v409
        %vm429 = vcmp.eq.s32.totalorder %v392, %v409
        %vm430 = vcmp.eq.s32.totalorder %v393, %v409
        %vm431 = vcmp.eq.s32.totalorder %v394, %v409
        %vm432 = vcmp.eq.s32.totalorder %v395, %v409
        %vm433 = vcmp.eq.s32.totalorder %v396, %v409
        %vm434 = vcmp.eq.s32.totalorder %v397, %v409
        %vm435 = vcmp.eq.s32.totalorder %v398, %v409
        %vm436 = vcmp.eq.s32.totalorder %v399, %v409
        %vm437 = vcmp.eq.s32.totalorder %v400, %v409
        %vm438 = vcmp.eq.s32.totalorder %v401, %v409
        %vm439 = vcmp.eq.s32.totalorder %v402, %v409
        %vm440 = vcmp.eq.s32.totalorder %v403, %v409
        %vm441 = vcmp.eq.s32.totalorder %v404, %v409
        %v442 = vsel %vm410, 1, 0
        %v443 = vsel %vm411, 1, 0
        %v444 = vsel %vm412, 1, 0
        %v445 = vsel %vm413, 1, 0
        %v446 = vsel %vm414, 1, 0
        %v447 = vsel %vm415, 1, 0
        %v448 = vsel %vm416, 1, 0
        %v449 = vsel %vm417, 1, 0
        %v450 = vsel %vm418, 1, 0
        %v451 = vsel %vm419, 1, 0
        %v452 = vsel %vm420, 1, 0
        %v453 = vsel %vm421, 1, 0
        %v454 = vsel %vm422, 1, 0
        %v455 = vsel %vm423, 1, 0
        %v456 = vsel %vm424, 1, 0
        %v457 = vsel %vm425, 1, 0
        %v458 = vsel %vm426, 1, 0
        %v459 = vsel %vm427, 1, 0
        %v460 = vsel %vm428, 1, 0
        %v461 = vsel %vm429, 1, 0
        %v462 = vsel %vm430, 1, 0
        %v463 = vsel %vm431, 1, 0
        %v464 = vsel %vm432, 1, 0
        %v465 = vsel %vm433, 1, 0
        %v466 = vsel %vm434, 1, 0
        %v467 = vsel %vm435, 1, 0
        %v468 = vsel %vm436, 1, 0
        %v469 = vsel %vm437, 1, 0
        %v470 = vsel %vm438, 1, 0
        %v471 = vsel %vm439, 1, 0
        %v472 = vsel %vm440, 1, 0
        %v473 = vsel %vm441, 1, 0
        %v474 = vcvt.s32.f32 %v442
        %v475 = vcvt.s32.f32 %v443
        %v476 = vcvt.s32.f32 %v444
        %v477 = vcvt.s32.f32 %v445
        %v478 = vcvt.s32.f32 %v446
        %v479 = vcvt.s32.f32 %v447
        %v480 = vcvt.s32.f32 %v448
        %v481 = vcvt.s32.f32 %v449
        %v482 = vcvt.s32.f32 %v450
        %v483 = vcvt.s32.f32 %v451
        %v484 = vcvt.s32.f32 %v452
        %v485 = vcvt.s32.f32 %v453
        %v486 = vcvt.s32.f32 %v454
        %v487 = vcvt.s32.f32 %v455
        %v488 = vcvt.s32.f32 %v456
        %v489 = vcvt.s32.f32 %v457
        %v490 = vcvt.s32.f32 %v458
        %v491 = vcvt.s32.f32 %v459
        %v492 = vcvt.s32.f32 %v460
        %v493 = vcvt.s32.f32 %v461
        %v494 = vcvt.s32.f32 %v462
        %v495 = vcvt.s32.f32 %v463
        %v496 = vcvt.s32.f32 %v464
        %v497 = vcvt.s32.f32 %v465
        %v498 = vcvt.s32.f32 %v466
        %v499 = vcvt.s32.f32 %v467
        %v500 = vcvt.s32.f32 %v468
        %v501 = vcvt.s32.f32 %v469
        %v502 = vcvt.s32.f32 %v470
        %v503 = vcvt.s32.f32 %v471
        %v504 = vcvt.s32.f32 %v472
        %v505 = vcvt.s32.f32 %v473
        %v506 = vpack.c.bf16 %v475, %v474
        %v507 = vpack.c.bf16 %v477, %v476
        %v508 = vpack.c.bf16 %v479, %v478
        %v509 = vpack.c.bf16 %v481, %v480
        %v510 = vpack.c.bf16 %v483, %v482
        %v511 = vpack.c.bf16 %v485, %v484
        %v512 = vpack.c.bf16 %v487, %v486
        %v513 = vpack.c.bf16 %v489, %v488
        %v514 = vpack.c.bf16 %v491, %v490
        %v515 = vpack.c.bf16 %v493, %v492
        %v516 = vpack.c.bf16 %v495, %v494
        %v517 = vpack.c.bf16 %v497, %v496
        %v518 = vpack.c.bf16 %v499, %v498
        %v519 = vpack.c.bf16 %v501, %v500
        %v520 = vpack.c.bf16 %v503, %v502
        %v521 = vpack.c.bf16 %v505, %v504
        %v522 = vld [vmem:[%s285] sm:$0xff]
        %v524 = vcombine.high %v522, %v522
        %v526 = vpack.c.bf16 %v522, %v522
        %v527 = vpack.c.bf16 %v524, %v524
        %v528 = vunpack.c.l.bf16 %v526
        %v529 = vunpack.c.l.bf16 %v527
        %v532 = vcombine.low %v528, %v529
        %v534 = vsub.f32 %v522, %v532
        %v536 = vcombine.high %v534, %v534
        %v538 = vpack.c.bf16 %v534, %v534
        %v539 = vpack.c.bf16 %v536, %v536
        %540 = vmatprep.subr.bf16.mxu0 0
        %541 = vmatpush1.bf16.msra.mxu0 %v513
        %542 = vmatprep.subr.bf16.mxu0 0
        %543 = vmatpush1.bf16.msra.mxu0 %v512
        %544 = vmatprep.subr.bf16.mxu0 0
        %545 = vmatpush1.bf16.msra.mxu0 %v511
        %546 = vmatprep.subr.bf16.mxu0 0
        %547 = vmatpush1.bf16.msra.mxu0 %v510
        %548 = vmatprep.subr.bf16.mxu0 0
        %549 = vmatpush1.bf16.msra.mxu0 %v509
        %550 = vmatprep.subr.bf16.mxu0 0
        %551 = vmatpush1.bf16.msra.mxu0 %v508
        %552 = vmatprep.subr.bf16.mxu0 0
        %553 = vmatpush1.bf16.msra.mxu0 %v507
        %554 = vmatprep.subr.bf16.mxu0 0
        %555 = vmatpush1.bf16.msra.mxu0 %v506
        %556 = vmatprep.subr.bf16.mxu0 0
        %557 = vmatpush2.bf16.msra.mxu0 %v521
        %558 = vmatprep.subr.bf16.mxu0 0
        %559 = vmatpush2.bf16.msra.mxu0 %v520
        %560 = vmatprep.subr.bf16.mxu0 0
        %561 = vmatpush2.bf16.msra.mxu0 %v519
        %562 = vmatprep.subr.bf16.mxu0 0
        %563 = vmatpush2.bf16.msra.mxu0 %v518
        %564 = vmatprep.subr.bf16.mxu0 0
        %565 = vmatpush2.bf16.msra.mxu0 %v517
        %566 = vmatprep.subr.bf16.mxu0 0
        %567 = vmatpush2.bf16.msra.mxu0 %v516
        %568 = vmatprep.subr.bf16.mxu0 0
        %569 = vmatpush2.bf16.msra.mxu0 %v515
        %570 = vmatprep.subr.bf16.mxu0 0
        %571 = vmatpush2.bf16.msra.mxu0 %v514
        %572 = vmatprep.mubr.bf16.mxu0 %v539
        %573 = vmatmul.mubr.bf16.gmra.mxu0 %v538
        %v574 = vpop.f32.mrf.mxu0
        %v575 = vadd.f32 0.0, %v574
        %v576 = vpop.f32.mrf.mxu0
        %v577 = vpop.f32.mrf.mxu0
        %v578 = vpop.f32.mrf.mxu0
        %579 = vdwg.mxu0
        %580 = vmatprep.subr.bf16.mxu0 0
        %581 = vmatpush1.bf16.msra.mxu0 %v513
        %582 = vmatprep.subr.bf16.mxu0 0
        %583 = vmatpush1.bf16.msra.mxu0 %v512
        %584 = vmatprep.subr.bf16.mxu0 0
        %585 = vmatpush1.bf16.msra.mxu0 %v511
        %586 = vmatprep.subr.bf16.mxu0 0
        %587 = vmatpush1.bf16.msra.mxu0 %v510
        %588 = vmatprep.subr.bf16.mxu0 0
        %589 = vmatpush1.bf16.msra.mxu0 %v509
        %590 = vmatprep.subr.bf16.mxu0 0
        %591 = vmatpush1.bf16.msra.mxu0 %v508
        %592 = vmatprep.subr.bf16.mxu0 0
        %593 = vmatpush1.bf16.msra.mxu0 %v507
        %594 = vmatprep.subr.bf16.mxu0 0
        %595 = vmatpush1.bf16.msra.mxu0 %v506
        %596 = vmatprep.subr.bf16.mxu0 0
        %597 = vmatpush2.bf16.msra.mxu0 %v521
        %598 = vmatprep.subr.bf16.mxu0 0
        %599 = vmatpush2.bf16.msra.mxu0 %v520
        %600 = vmatprep.subr.bf16.mxu0 0
        %601 = vmatpush2.bf16.msra.mxu0 %v519
        %602 = vmatprep.subr.bf16.mxu0 0
        %603 = vmatpush2.bf16.msra.mxu0 %v518
        %604 = vmatprep.subr.bf16.mxu0 0
        %605 = vmatpush2.bf16.msra.mxu0 %v517
        %606 = vmatprep.subr.bf16.mxu0 0
        %607 = vmatpush2.bf16.msra.mxu0 %v516
        %608 = vmatprep.subr.bf16.mxu0 0
        %609 = vmatpush2.bf16.msra.mxu0 %v515
        %610 = vmatprep.subr.bf16.mxu0 0
        %611 = vmatpush2.bf16.msra.mxu0 %v514
        %612 = vmatprep.mubr.bf16.mxu0 %v527
        %613 = vmatmul.mubr.bf16.gmra.mxu0 %v526
        %v614 = vpop.f32.mrf.mxu0
        %v615 = vadd.f32 %v575, %v614
        %v616 = vpop.f32.mrf.mxu0
        %v617 = vpop.f32.mrf.mxu0
        %v618 = vpop.f32.mrf.mxu0
        %619 = vdwg.mxu0
        %v620 = vld [vmem:[#allocation2] sm:$0xf]
        %v621 = vadd.f32 %v620, %v615
        %622 = vst [vmem:[#allocation2] sm:$0xf] %v621
        // Predicated region
        $region57: #{tpu_custom_call.1} parent=35 // pred_check
          %p623 = pneg %p333
        $region58: #{tpu_custom_call.1} parent=35 // pred_check_branch
          %625 = sbr.rel (%p623) target = $region60
        $region59: #{tpu_custom_call.1} parent=35 // pred_region
          %v626 = vld [vmem:[%s294] sm:$0xf]
          %v627 = vld [vmem:[%s276] sm:$0x1]
          %v628 = vld [vmem:[#allocation2] sm:$0xf]
          %v629 = vadd.f32 %v626, 0.0001
          %v630 = vrcp.pop %v629
          %v631 = vmul.f32 %v628, %v630
          %v632 = vsub.f32 %v631, 1.0
          %v634 = vlaneseq
          %v635 = vshrl.u32 %v634, 7
          %v636 = vsub.s32 0, %v635
          %v637 = vrot.slane %v627, %v636
          %v639 = vmul.f32 %v632, %v637
          %v640 = vand.u32 2147483647, %v639
          %vm641 = vcmask 1043456
          %v642 = vsel %vm641, %v640, 0.0
          %643 = vadd.xlane.f32.xlu0 %v642
          %v644 = vpop.xlane.xlu0 %643
          %v645 = vrot.slane %v644, 4
          %v646 = vadd.f32 %v644, %v645
          %v647 = vrot.slane %v646, 2
          %v648 = vadd.f32 %v646, %v647
          %v649 = vrot.slane %v648, 1
          %v650 = vadd.f32 %v648, %v649
          %s651 = vtos %v650
          %v652 = vstv %s651
          %653 = vst [vmem:[%s330] sm:$0x1] %v652
        $region60: #{tpu_custom_call.1} parent=35 // pred_fallthru
          _
        %s654 = sand.u32 %s153, 1
        %s655 = scalar_lea.sflag [#allocation5], %s654
        %s656 = sand.u32 %s153, 1
        %s657 = scalar_lea.vmem [#allocation11], %s656
        // Predicated region
        $region61: #{tpu_custom_call.1} parent=35 // pred_check
          %p658 = pneg %p163
        $region62: #{tpu_custom_call.1} parent=35 // pred_check_branch
          %660 = sbr.rel (%p658) target = $region64
        $region63: #{tpu_custom_call.1} parent=35 // pred_region
          %s662 = ssub.s32 16, 16
          %663 = vsyncadd %s655, %s662
          %s664 = smul.addr %s31, 16
          %s665 = scalar_lea.hbm %s4, %s664
          %s667 = sshll.u32 %s657, 4
          %s668 = int_to_ptr.vmem [resolvable:$true] %s667
          %670 = dma.vmem_to_hbm [thread:$0]  %s668, 16, %s665, %s655
        $region64: #{tpu_custom_call.1} parent=35 // pred_fallthru
          _
      $region36: #{tpu_custom_call.1} parent=5 // pred_fallthru
        _
      %p671 = scmp.le.s32.totalorder 2, %s22
      // Predicated region
      $region65: #{tpu_custom_call.1} parent=5 // pred_check
        %p672 = pneg %p671
      $region66: #{tpu_custom_call.1} parent=5 // pred_check_branch
        %674 = sbr.rel (%p672) target = $region68
      $region67: #{tpu_custom_call.1} parent=5 // pred_region
        %s675 = ssub.s32 %s22, 2
        // Predicated region
        $region69: #{tpu_custom_call.1} parent=67 // pred_check
          %p676 = pneg %p169
        $region70: #{tpu_custom_call.1} parent=67 // pred_check_branch
          %678 = sbr.rel (%p676) target = $region72
        $region71: #{tpu_custom_call.1} parent=67 // pred_region
          %s679 = sand.u32 %s154, 1
          %s680 = scalar_lea.sflag [#allocation5], %s679
          %s681 = sand.u32 %s154, 1
          %s682 = scalar_lea.vmem [#allocation11], %s681
          %683 = dma.done %s680, 16
        $region72: #{tpu_custom_call.1} parent=67 // pred_fallthru
          _
      $region68: #{tpu_custom_call.1} parent=5 // pred_fallthru
        _
    $region6: #{tpu_custom_call.1} parent=1 // loop_footer
      %s26 = sadd.s32 1, %s22
    $region7: #{tpu_custom_call.1} parent=1 // loop_footer_branch
      %21 = sbr.rel target = $region3
    $region8: #{tpu_custom_call.1} parent=1 // loop_exit
      _
    %684 = vsyncpa [#allocation4], 1
    %s685 = scalar_lea.sflag [#allocation4], 1
    %686 = vsyncpa %s685, 1
    %687 = vsyncpa [#allocation7], 1
    %s688 = scalar_lea.sflag [#allocation7], 1
    %689 = vsyncpa %s688, 1
    %690 = vsyncpa [#allocation10], 1
    %s691 = scalar_lea.sflag [#allocation10], 1
    %692 = vsyncpa %s691, 1
    %693 = vsyncpa [#allocation5], 1
    %s694 = scalar_lea.sflag [#allocation5], 1
    %695 = vsyncpa %s694, 1

</llo_original>
